<compile_context>
chip_gen: v6e
topology: v6e:2x2x1
jax: 0.10.0
libtpu: 0.0.40
codegen_flags: <defaults>
</compile_context>

<pallas_src>
import jax
import jax.numpy as jnp
from jax.experimental import pallas as pl
from jax.experimental.pallas import tpu as pltpu

IN_DIM = 512
HID_DIM = 256
OUT_DIM = 100
OUT_PAD = 128          # lane-dense output width; extra cols sliced off outside
BN_EPS = 1e-5


# ----------------------------- Pallas kernel --------------------------------

def _mapping_kernel(x_ref, w1_ref, s_ref, t_ref, w2_ref, b2_ref, o_ref):
    # Linear(512, 256) on the MXU: bf16 inputs, f32 accumulation.
    h = jnp.dot(x_ref[...], w1_ref[...], preferred_element_type=jnp.float32)
    # Folded Linear1 bias + eval-mode BatchNorm1d, then ReLU -- all f32 (VPU).
    h = h * s_ref[...] + t_ref[...]
    h = jnp.maximum(h, 0.0)
    # Linear(256, 100 -> padded 128) on the MXU + Tanh epilogue (EUP), f32 out.
    y = jnp.dot(h.astype(jnp.bfloat16), w2_ref[...],
                preferred_element_type=jnp.float32)
    o_ref[...] = jnp.tanh(y + b2_ref[...])


# ------------------------------- wrapper -------------------------------------

def _round_up(x, m):
    return (x + m - 1) // m * m


def mapping_network(x, params):
    """x: (N, 512) float32  ->  (N, 100, 1, 1) float32 in [-1, 1]."""
    n, d_in = x.shape
    assert d_in == IN_DIM, d_in

    w1, b1 = params["linear1"]                      # (512,256), (256,)
    gamma, beta, mean, var = params["bn1"]          # (256,) each
    w2, b2 = params["linear2"]                      # (256,100), (100,)

    # Fold Linear1 bias + eval-mode BN into per-channel scale/shift (f32).
    s = gamma / jnp.sqrt(var + BN_EPS)
    t = (b1 - mean) * s + beta

    # Pad the 100-wide head to 128 lanes for unmasked, lane-dense stores.
    w2_p = jnp.pad(w2, ((0, 0), (0, OUT_PAD - OUT_DIM)))
    b2_p = jnp.pad(b2, (0, OUT_PAD - OUT_DIM))

    # Tile the batch dimension (sublane-aligned), pad N up to a whole grid.
    tile_m = min(512, _round_up(n, 8))
    n_pad = _round_up(n, tile_m)
    x_p = jnp.pad(x, ((0, n_pad - n), (0, 0))).astype(jnp.bfloat16)

    out = pl.pallas_call(
        _mapping_kernel,
        out_shape=jax.ShapeDtypeStruct((n_pad, OUT_PAD), jnp.float32),
        grid_spec=pltpu.PrefetchScalarGridSpec(
            num_scalar_prefetch=0,
            grid=(n_pad // tile_m,),
            in_specs=[
                pl.BlockSpec((tile_m, IN_DIM), lambda i: (i, 0)),    # x tile
                pl.BlockSpec((IN_DIM, HID_DIM), lambda i: (0, 0)),   # W1
                pl.BlockSpec((1, HID_DIM), lambda i: (0, 0)),        # BN scale
                pl.BlockSpec((1, HID_DIM), lambda i: (0, 0)),        # BN shift
                pl.BlockSpec((HID_DIM, OUT_PAD), lambda i: (0, 0)),  # W2 (pad)
                pl.BlockSpec((1, OUT_PAD), lambda i: (0, 0)),        # b2 (pad)
            ],
            out_specs=pl.BlockSpec((tile_m, OUT_PAD), lambda i: (i, 0)),
        ),
        compiler_params=pltpu.CompilerParams(
            dimension_semantics=("parallel",),
            vmem_limit_bytes=32 * 1024 * 1024,
        ),
    )(
        x_p,
        w1.astype(jnp.bfloat16),
        s.reshape(1, HID_DIM).astype(jnp.float32),
        t.reshape(1, HID_DIM).astype(jnp.float32),
        w2_p.astype(jnp.bfloat16),
        b2_p.reshape(1, OUT_PAD).astype(jnp.float32),
    )

    y = out[:n, :OUT_DIM]                 # drop batch pad + lane pad
    return y[:, :, None, None]            # (N, 100, 1, 1)


# ---------------------------- parameter init ---------------------------------

def init_params(key):
    ks = jax.random.split(key, 10)
    w1 = jax.random.normal(ks[0], (IN_DIM, HID_DIM), jnp.float32) / jnp.sqrt(
        jnp.float32(IN_DIM))
    b1 = 0.01 * jax.random.normal(ks[1], (HID_DIM,), jnp.float32)
    gamma = 1.0 + 0.1 * jax.random.normal(ks[2], (HID_DIM,), jnp.float32)
    beta = 0.1 * jax.random.normal(ks[3], (HID_DIM,), jnp.float32)
    mean = 0.1 * jax.random.normal(ks[4], (HID_DIM,), jnp.float32)
    var = 1.0 + 0.1 * jax.random.uniform(ks[5], (HID_DIM,), jnp.float32)
    w2 = jax.random.normal(ks[6], (HID_DIM, OUT_DIM), jnp.float32) / jnp.sqrt(
        jnp.float32(HID_DIM))
    b2 = 0.01 * jax.random.normal(ks[7], (OUT_DIM,), jnp.float32)
    return {
        "linear1": (w1, b1),
        "bn1": (gamma, beta, mean, var),
        "linear2": (w2, b2),
    }


if __name__ == "__main__":
    key = jax.random.PRNGKey(0)
    k_x, k_p = jax.random.split(key)
    # MappingNetwork input is a (N, 512) latent; Linear(512, 256) forces 512.
    x = jax.random.normal(k_x, (2, 512), jnp.float32)
    params = init_params(k_p)

    out = mapping_network(x, params)
    out = jax.block_until_ready(out)
    assert out.shape == (2, 100, 1, 1), out.shape
    assert bool(jnp.all(jnp.isfinite(out)))
    assert bool(jnp.all(jnp.abs(out) <= 1.0))   # Tanh range
    print("KERNEL_OK")
</pallas_src>

<mosaic_0001>
module attributes {stable_mosaic.version = 11 : i64} {
  func.func @_mapping_kernel(%arg0: i32, %arg1: memref<8x512xbf16, #tpu.memory_space<vmem>>, %arg2: memref<512x256xbf16, #tpu.memory_space<vmem>>, %arg3: memref<1x256xf32, #tpu.memory_space<vmem>>, %arg4: memref<1x256xf32, #tpu.memory_space<vmem>>, %arg5: memref<256x128xbf16, #tpu.memory_space<vmem>>, %arg6: memref<1x128xf32, #tpu.memory_space<vmem>>, %arg7: memref<8x128xf32, #tpu.memory_space<vmem>>) attributes {dimension_semantics = [#tpu.dimension_semantics<parallel>], iteration_bounds = array<i64: 1>, scalar_prefetch = 0 : i64, scratch_operands = 0 : i64, tpu.core_type = #tpu.core_type<tc>, window_params = [{transform_indices = @transform_0, window_bounds = array<i64: 8, 512>}, {pipeline_mode = #tpu.pipeline_mode<synchronous>, transform_indices = @transform_1, window_bounds = array<i64: 512, 256>}, {pipeline_mode = #tpu.pipeline_mode<synchronous>, transform_indices = @transform_2, window_bounds = array<i64: 1, 256>}, {pipeline_mode = #tpu.pipeline_mode<synchronous>, transform_indices = @transform_3, window_bounds = array<i64: 1, 256>}, {pipeline_mode = #tpu.pipeline_mode<synchronous>, transform_indices = @transform_4, window_bounds = array<i64: 256, 128>}, {pipeline_mode = #tpu.pipeline_mode<synchronous>, transform_indices = @transform_5, window_bounds = array<i64: 1, 128>}, {transform_indices = @transform_6, window_bounds = array<i64: 8, 128>}]} {
    %c0 = arith.constant 0 : index
    %c0_0 = arith.constant 0 : index
    %0 = vector.load %arg1[%c0, %c0_0] : memref<8x512xbf16, #tpu.memory_space<vmem>>, vector<8x512xbf16>
    %c0_1 = arith.constant 0 : index
    %c0_2 = arith.constant 0 : index
    %1 = vector.load %arg2[%c0_1, %c0_2] : memref<512x256xbf16, #tpu.memory_space<vmem>>, vector<512x256xbf16>
    %cst = arith.constant dense<0.000000e+00> : vector<8x256xf32>
    %2 = tpu.matmul %0, %1, %cst {dimension_numbers = #tpu.dot_dimension_numbers<[1], [0], [0], [1], [0, 0, 1, 1], [], []>} : vector<8x512xbf16>, vector<512x256xbf16>, vector<8x256xf32> -> vector<8x256xf32>
    %c0_3 = arith.constant 0 : index
    %c0_4 = arith.constant 0 : index
    %3 = vector.load %arg3[%c0_3, %c0_4] : memref<1x256xf32, #tpu.memory_space<vmem>>, vector<1x256xf32>
    %4 = vector.broadcast %3 : vector<1x256xf32> to vector<8x256xf32>
    %5 = arith.mulf %2, %4 : vector<8x256xf32>
    %c0_5 = arith.constant 0 : index
    %c0_6 = arith.constant 0 : index
    %6 = vector.load %arg4[%c0_5, %c0_6] : memref<1x256xf32, #tpu.memory_space<vmem>>, vector<1x256xf32>
    %7 = vector.broadcast %6 : vector<1x256xf32> to vector<8x256xf32>
    %8 = arith.addf %5, %7 : vector<8x256xf32>
    %cst_7 = arith.constant 0.000000e+00 : f32
    %9 = vector.broadcast %cst_7 : f32 to vector<8x256xf32>
    %10 = arith.maximumf %8, %9 : vector<8x256xf32>
    %11 = arith.truncf %10 : vector<8x256xf32> to vector<8x256xbf16>
    %c0_8 = arith.constant 0 : index
    %c0_9 = arith.constant 0 : index
    %12 = vector.load %arg5[%c0_8, %c0_9] : memref<256x128xbf16, #tpu.memory_space<vmem>>, vector<256x128xbf16>
    %cst_10 = arith.constant dense<0.000000e+00> : vector<8x128xf32>
    %13 = tpu.matmul %11, %12, %cst_10 {dimension_numbers = #tpu.dot_dimension_numbers<[1], [0], [0], [1], [0, 0, 1, 1], [], []>} : vector<8x256xbf16>, vector<256x128xbf16>, vector<8x128xf32> -> vector<8x128xf32>
    %c0_11 = arith.constant 0 : index
    %c0_12 = arith.constant 0 : index
    %14 = vector.load %arg6[%c0_11, %c0_12] : memref<1x128xf32, #tpu.memory_space<vmem>>, vector<1x128xf32>
    %15 = vector.broadcast %14 : vector<1x128xf32> to vector<8x128xf32>
    %16 = arith.addf %13, %15 : vector<8x128xf32>
    %17 = math.tanh %16 : vector<8x128xf32>
    %c0_13 = arith.constant 0 : index
    %c0_14 = arith.constant 0 : index
    %18 = vector.load %arg7[%c0_13, %c0_14] : memref<8x128xf32, #tpu.memory_space<vmem>>, vector<8x128xf32>
    tpu.vector_store %arg7[%c0_13, %c0_14], %17 {strides = array<i32>} : memref<8x128xf32, #tpu.memory_space<vmem>>, vector<8x128xf32>,
    return
  }
  func.func @transform_0(%arg0: i32) -> (i32, i32) {
    %c0_i32 = arith.constant 0 : i32
    %c0_i32_0 = arith.constant 0 : i32
    return %arg0, %c0_i32 : i32, i32
  }
  func.func @transform_1(%arg0: i32) -> (i32, i32) {
    %c0_i32 = arith.constant 0 : i32
    %c0_i32_0 = arith.constant 0 : i32
    %c0_i32_1 = arith.constant 0 : i32
    return %c0_i32, %c0_i32_0 : i32, i32
  }
  func.func @transform_2(%arg0: i32) -> (i32, i32) {
    %c0_i32 = arith.constant 0 : i32
    %c0_i32_0 = arith.constant 0 : i32
    %c0_i32_1 = arith.constant 0 : i32
    return %c0_i32, %c0_i32_0 : i32, i32
  }
  func.func @transform_3(%arg0: i32) -> (i32, i32) {
    %c0_i32 = arith.constant 0 : i32
    %c0_i32_0 = arith.constant 0 : i32
    %c0_i32_1 = arith.constant 0 : i32
    return %c0_i32, %c0_i32_0 : i32, i32
  }
  func.func @transform_4(%arg0: i32) -> (i32, i32) {
    %c0_i32 = arith.constant 0 : i32
    %c0_i32_0 = arith.constant 0 : i32
    %c0_i32_1 = arith.constant 0 : i32
    return %c0_i32, %c0_i32_0 : i32, i32
  }
  func.func @transform_5(%arg0: i32) -> (i32, i32) {
    %c0_i32 = arith.constant 0 : i32
    %c0_i32_0 = arith.constant 0 : i32
    %c0_i32_1 = arith.constant 0 : i32
    return %c0_i32, %c0_i32_0 : i32, i32
  }
  func.func @transform_6(%arg0: i32) -> (i32, i32) {
    %c0_i32 = arith.constant 0 : i32
    %c0_i32_0 = arith.constant 0 : i32
    return %arg0, %c0_i32 : i32, i32
  }
}

</mosaic_0001>

<llo_original>
// kernel: tpu_custom_call.1
$region0: #{tpu_custom_call.1}
  #allocation0 [shape = 'u32[]', space=smem, size = 0x4, offset = 0x4, fixed_abs, tag = 'smem constant byte address 0x4 - core index']
  #allocation1 [shape = 'u32[144,128]{1,0:T(1,128)}', space=vmem, size = 0x12000, scoped, tag = 'internal scratch']
  %s0 = inlined_call_operand.hbm [shape: bf16[8,512], index: 0, kind: input, shape index: {}]
  %s1 = inlined_call_operand.hbm [shape: bf16[512,256], index: 1, kind: input, shape index: {}]
  %s2 = inlined_call_operand.vmem [shape: f32[1,256], index: 2, kind: input, shape index: {}]
  %s3 = inlined_call_operand.vmem [shape: f32[1,256], index: 3, kind: input, shape index: {}]
  %s4 = inlined_call_operand.hbm [shape: bf16[256,128], index: 4, kind: input, shape index: {}]
  %s5 = inlined_call_operand.vmem [shape: f32[1,128], index: 5, kind: input, shape index: {}]
  %s6 = inlined_call_operand.hbm [shape: f32[8,128], index: 6, kind: output, shape index: {}]
  %s7 = sld [smem:[#allocation0]]
  $region46: #{tpu_custom_call.1} parent=0
    _
  %s9 = ssub.s32 1, %s7
  %s10 = scalar_select 0, %s9, %s7
  $region1: #{tpu_custom_call.1} parent=0
    #allocation2 [shape = 'u8[8192]{0}', space=vmem, size = 0x2000, scoped, tag = 'input window, operand 0, single buffered']
    #allocation3 [shape = 's32[1]{0}', space=sflag, size = 0x4, scoped, tag = 'scoped memory for tpu_custom_call.1']
    #allocation4 [shape = 's32[1]{0}', space=sflag, size = 0x4, scoped, tag = 'scoped memory for tpu_custom_call.1']
    #allocation5 [shape = 'u8[262144]{0}', space=vmem, size = 0x40000, scoped, tag = 'input window, operand 1, single buffered']
    #allocation6 [shape = 's32[1]{0}', space=sflag, size = 0x4, scoped, tag = 'scoped memory for tpu_custom_call.1']
    #allocation7 [shape = 'u8[65536]{0}', space=vmem, size = 0x10000, scoped, tag = 'input window, operand 4, single buffered']
    #allocation8 [shape = 'u8[4096]{0}', space=vmem, size = 0x1000, scoped, tag = 'output window, operand 0, single buffered']
    %11 = vsyncpa [#allocation3], 0
    %12 = vsyncpa [#allocation6], 0
    %13 = vsyncpa [#allocation4], 0
    // Predicated region
    $region2: #{tpu_custom_call.1} parent=1 // pred_check
      _
    $region3: #{tpu_custom_call.1} parent=1 // pred_check_branch
      %15 = sbr.rel (0) target = $region5
    $region4: #{tpu_custom_call.1} parent=1 // pred_region
      %s17 = ssub.s32 256, 256
      %18 = vsyncadd [#allocation3], %s17
      %s20 = sshll.u32 [#allocation2], 4
      %s21 = int_to_ptr.vmem [resolvable:$true] %s20
      %23 = dma.hbm_to_vmem [thread:$0]  %s0, 256, %s21, [#allocation3]
    $region5: #{tpu_custom_call.1} parent=1 // pred_fallthru
      _
    // Predicated region
    $region6: #{tpu_custom_call.1} parent=1 // pred_check
      _
    $region7: #{tpu_custom_call.1} parent=1 // pred_check_branch
      %25 = sbr.rel (0) target = $region9
    $region8: #{tpu_custom_call.1} parent=1 // pred_region
      %s27 = ssub.s32 8192, 8192
      %28 = vsyncadd [#allocation6], %s27
      %s29 = sshll.u32 [#allocation5], 4
      %s30 = int_to_ptr.vmem [resolvable:$true] %s29
      %35 = dma.hbm_to_vmem [thread:$0]  %s1, 8192, %s30, [#allocation6], 128, 128, 8
    $region9: #{tpu_custom_call.1} parent=1 // pred_fallthru
      _
    // Predicated region
    $region10: #{tpu_custom_call.1} parent=1 // pred_check
      _
    $region11: #{tpu_custom_call.1} parent=1 // pred_check_branch
      %37 = sbr.rel (0) target = $region13
    $region12: #{tpu_custom_call.1} parent=1 // pred_region
      _
    $region13: #{tpu_custom_call.1} parent=1 // pred_fallthru
      _
    // Predicated region
    $region14: #{tpu_custom_call.1} parent=1 // pred_check
      _
    $region15: #{tpu_custom_call.1} parent=1 // pred_check_branch
      %39 = sbr.rel (0) target = $region17
    $region16: #{tpu_custom_call.1} parent=1 // pred_region
      _
    $region17: #{tpu_custom_call.1} parent=1 // pred_fallthru
      _
    // Predicated region
    $region18: #{tpu_custom_call.1} parent=1 // pred_check
      _
    $region19: #{tpu_custom_call.1} parent=1 // pred_check_branch
      %41 = sbr.rel (0) target = $region21
    $region20: #{tpu_custom_call.1} parent=1 // pred_region
      %s43 = ssub.s32 2048, 2048
      %44 = vsyncadd [#allocation6], %s43
      %s45 = sshll.u32 [#allocation7], 4
      %s46 = int_to_ptr.vmem [resolvable:$true] %s45
      %51 = dma.hbm_to_vmem [thread:$0]  %s4, 2048, %s46, [#allocation6], 64, 64, 4
    $region21: #{tpu_custom_call.1} parent=1 // pred_fallthru
      _
    // Predicated region
    $region22: #{tpu_custom_call.1} parent=1 // pred_check
      _
    $region23: #{tpu_custom_call.1} parent=1 // pred_check_branch
      %53 = sbr.rel (0) target = $region25
    $region24: #{tpu_custom_call.1} parent=1 // pred_region
      _
    $region25: #{tpu_custom_call.1} parent=1 // pred_fallthru
      _
    // Predicated region
    $region26: #{tpu_custom_call.1} parent=1 // pred_check
      _
    $region27: #{tpu_custom_call.1} parent=1 // pred_check_branch
      %55 = sbr.rel (0) target = $region29
    $region28: #{tpu_custom_call.1} parent=1 // pred_region
      %56 = dma.done [#allocation3], 256
    $region29: #{tpu_custom_call.1} parent=1 // pred_fallthru
      _
    // Predicated region
    $region30: #{tpu_custom_call.1} parent=1 // pred_check
      _
    $region31: #{tpu_custom_call.1} parent=1 // pred_check_branch
      %58 = sbr.rel (0) target = $region33
    $region32: #{tpu_custom_call.1} parent=1 // pred_region
      %59 = dma.done [#allocation6], 8192
    $region33: #{tpu_custom_call.1} parent=1 // pred_fallthru
      _
    // Predicated region
    $region34: #{tpu_custom_call.1} parent=1 // pred_check
      _
    $region35: #{tpu_custom_call.1} parent=1 // pred_check_branch
      %61 = sbr.rel (0) target = $region37
    $region36: #{tpu_custom_call.1} parent=1 // pred_region
      %62 = dma.done [#allocation6], 2048
    $region37: #{tpu_custom_call.1} parent=1 // pred_fallthru
      _
    %v64 = vld [vmem:[#allocation2] sm:$0xff]
    %v65 = vld [vmem:[#allocation2 + $0x8] sm:$0xff]
    %v66 = vld [vmem:[#allocation5] sm:$0xff]
    %v67 = vld [vmem:[#allocation5 + $0x8] sm:$0xff]
    %v68 = vld [vmem:[#allocation5 + $0x10] sm:$0xff]
    %v69 = vld [vmem:[#allocation5 + $0x18] sm:$0xff]
    %v70 = vld [vmem:[#allocation5 + $0x20] sm:$0xff]
    %v71 = vld [vmem:[#allocation5 + $0x28] sm:$0xff]
    %v72 = vld [vmem:[#allocation5 + $0x30] sm:$0xff]
    %v73 = vld [vmem:[#allocation5 + $0x38] sm:$0xff]
    %v74 = vld [vmem:[#allocation5 + $0x40] sm:$0xff]
    %v75 = vld [vmem:[#allocation5 + $0x48] sm:$0xff]
    %v76 = vld [vmem:[#allocation5 + $0x50] sm:$0xff]
    %v77 = vld [vmem:[#allocation5 + $0x58] sm:$0xff]
    %v78 = vld [vmem:[#allocation5 + $0x60] sm:$0xff]
    %v79 = vld [vmem:[#allocation5 + $0x68] sm:$0xff]
    %v80 = vld [vmem:[#allocation5 + $0x70] sm:$0xff]
    %v81 = vld [vmem:[#allocation5 + $0x78] sm:$0xff]
    %v82 = vld [vmem:[#allocation5 + $0x80] sm:$0xff]
    %v83 = vld [vmem:[#allocation5 + $0x88] sm:$0xff]
    %v84 = vld [vmem:[#allocation5 + $0x90] sm:$0xff]
    %v85 = vld [vmem:[#allocation5 + $0x98] sm:$0xff]
    %v86 = vld [vmem:[#allocation5 + $0xa0] sm:$0xff]
    %v87 = vld [vmem:[#allocation5 + $0xa8] sm:$0xff]
    %v88 = vld [vmem:[#allocation5 + $0xb0] sm:$0xff]
    %v89 = vld [vmem:[#allocation5 + $0xb8] sm:$0xff]
    %v90 = vld [vmem:[#allocation5 + $0xc0] sm:$0xff]
    %v91 = vld [vmem:[#allocation5 + $0xc8] sm:$0xff]
    %v92 = vld [vmem:[#allocation5 + $0xd0] sm:$0xff]
    %v93 = vld [vmem:[#allocation5 + $0xd8] sm:$0xff]
    %v94 = vld [vmem:[#allocation5 + $0xe0] sm:$0xff]
    %v95 = vld [vmem:[#allocation5 + $0xe8] sm:$0xff]
    %v96 = vld [vmem:[#allocation5 + $0xf0] sm:$0xff]
    %v97 = vld [vmem:[#allocation5 + $0xf8] sm:$0xff]
    %v98 = vld [vmem:[#allocation5 + $0x100] sm:$0xff]
    %v99 = vld [vmem:[#allocation5 + $0x108] sm:$0xff]
    %v100 = vld [vmem:[#allocation5 + $0x110] sm:$0xff]
    %v101 = vld [vmem:[#allocation5 + $0x118] sm:$0xff]
    %v102 = vld [vmem:[#allocation5 + $0x120] sm:$0xff]
    %v103 = vld [vmem:[#allocation5 + $0x128] sm:$0xff]
    %v104 = vld [vmem:[#allocation5 + $0x130] sm:$0xff]
    %v105 = vld [vmem:[#allocation5 + $0x138] sm:$0xff]
    %v106 = vld [vmem:[#allocation5 + $0x140] sm:$0xff]
    %v107 = vld [vmem:[#allocation5 + $0x148] sm:$0xff]
    %v108 = vld [vmem:[#allocation5 + $0x150] sm:$0xff]
    %v109 = vld [vmem:[#allocation5 + $0x158] sm:$0xff]
    %v110 = vld [vmem:[#allocation5 + $0x160] sm:$0xff]
    %v111 = vld [vmem:[#allocation5 + $0x168] sm:$0xff]
    %v112 = vld [vmem:[#allocation5 + $0x170] sm:$0xff]
    %v113 = vld [vmem:[#allocation5 + $0x178] sm:$0xff]
    %v114 = vld [vmem:[#allocation5 + $0x180] sm:$0xff]
    %v115 = vld [vmem:[#allocation5 + $0x188] sm:$0xff]
    %v116 = vld [vmem:[#allocation5 + $0x190] sm:$0xff]
    %v117 = vld [vmem:[#allocation5 + $0x198] sm:$0xff]
    %v118 = vld [vmem:[#allocation5 + $0x1a0] sm:$0xff]
    %v119 = vld [vmem:[#allocation5 + $0x1a8] sm:$0xff]
    %v120 = vld [vmem:[#allocation5 + $0x1b0] sm:$0xff]
    %v121 = vld [vmem:[#allocation5 + $0x1b8] sm:$0xff]
    %v122 = vld [vmem:[#allocation5 + $0x1c0] sm:$0xff]
    %v123 = vld [vmem:[#allocation5 + $0x1c8] sm:$0xff]
    %v124 = vld [vmem:[#allocation5 + $0x1d0] sm:$0xff]
    %v125 = vld [vmem:[#allocation5 + $0x1d8] sm:$0xff]
    %v126 = vld [vmem:[#allocation5 + $0x1e0] sm:$0xff]
    %v127 = vld [vmem:[#allocation5 + $0x1e8] sm:$0xff]
    %v128 = vld [vmem:[#allocation5 + $0x1f0] sm:$0xff]
    %v129 = vld [vmem:[#allocation5 + $0x1f8] sm:$0xff]
    %v132 = vunpack.c.l.b16 %v64
    %v133 = vunpack.c.h.b16 %v64
    %v134 = vunpack.c.l.b16 %v65
    %v135 = vunpack.c.h.b16 %v65
    %v136 = vpack.c.b16 %v132, %v132
    %v137 = vpack.c.b16 %v133, %v133
    %v138 = vpack.c.b16 %v134, %v134
    %v139 = vpack.c.b16 %v135, %v135
    %v208 = vunpack.c.l.b16 %v66
    %v209 = vunpack.c.h.b16 %v66
    %v210 = vunpack.c.l.b16 %v67
    %v211 = vunpack.c.h.b16 %v67
    %v212 = vunpack.c.l.b16 %v68
    %v213 = vunpack.c.h.b16 %v68
    %v214 = vunpack.c.l.b16 %v69
    %v215 = vunpack.c.h.b16 %v69
    %v216 = vunpack.c.l.b16 %v70
    %v217 = vunpack.c.h.b16 %v70
    %v218 = vunpack.c.l.b16 %v71
    %v219 = vunpack.c.h.b16 %v71
    %v220 = vunpack.c.l.b16 %v72
    %v221 = vunpack.c.h.b16 %v72
    %v222 = vunpack.c.l.b16 %v73
    %v223 = vunpack.c.h.b16 %v73
    %v224 = vunpack.c.l.b16 %v74
    %v225 = vunpack.c.h.b16 %v74
    %v226 = vunpack.c.l.b16 %v75
    %v227 = vunpack.c.h.b16 %v75
    %v228 = vunpack.c.l.b16 %v76
    %v229 = vunpack.c.h.b16 %v76
    %v230 = vunpack.c.l.b16 %v77
    %v231 = vunpack.c.h.b16 %v77
    %v232 = vunpack.c.l.b16 %v78
    %v233 = vunpack.c.h.b16 %v78
    %v234 = vunpack.c.l.b16 %v79
    %v235 = vunpack.c.h.b16 %v79
    %v236 = vunpack.c.l.b16 %v80
    %v237 = vunpack.c.h.b16 %v80
    %v238 = vunpack.c.l.b16 %v81
    %v239 = vunpack.c.h.b16 %v81
    %v240 = vunpack.c.l.b16 %v82
    %v241 = vunpack.c.h.b16 %v82
    %v242 = vunpack.c.l.b16 %v83
    %v243 = vunpack.c.h.b16 %v83
    %v244 = vunpack.c.l.b16 %v84
    %v245 = vunpack.c.h.b16 %v84
    %v246 = vunpack.c.l.b16 %v85
    %v247 = vunpack.c.h.b16 %v85
    %v248 = vunpack.c.l.b16 %v86
    %v249 = vunpack.c.h.b16 %v86
    %v250 = vunpack.c.l.b16 %v87
    %v251 = vunpack.c.h.b16 %v87
    %v252 = vunpack.c.l.b16 %v88
    %v253 = vunpack.c.h.b16 %v88
    %v254 = vunpack.c.l.b16 %v89
    %v255 = vunpack.c.h.b16 %v89
    %v256 = vunpack.c.l.b16 %v90
    %v257 = vunpack.c.h.b16 %v90
    %v258 = vunpack.c.l.b16 %v91
    %v259 = vunpack.c.h.b16 %v91
    %v260 = vunpack.c.l.b16 %v92
    %v261 = vunpack.c.h.b16 %v92
    %v262 = vunpack.c.l.b16 %v93
    %v263 = vunpack.c.h.b16 %v93
    %v264 = vunpack.c.l.b16 %v94
    %v265 = vunpack.c.h.b16 %v94
    %v266 = vunpack.c.l.b16 %v95
    %v267 = vunpack.c.h.b16 %v95
    %v268 = vunpack.c.l.b16 %v96
    %v269 = vunpack.c.h.b16 %v96
    %v270 = vunpack.c.l.b16 %v97
    %v271 = vunpack.c.h.b16 %v97
    %v272 = vunpack.c.l.b16 %v98
    %v273 = vunpack.c.h.b16 %v98
    %v274 = vunpack.c.l.b16 %v99
    %v275 = vunpack.c.h.b16 %v99
    %v276 = vunpack.c.l.b16 %v100
    %v277 = vunpack.c.h.b16 %v100
    %v278 = vunpack.c.l.b16 %v101
    %v279 = vunpack.c.h.b16 %v101
    %v280 = vunpack.c.l.b16 %v102
    %v281 = vunpack.c.h.b16 %v102
    %v282 = vunpack.c.l.b16 %v103
    %v283 = vunpack.c.h.b16 %v103
    %v284 = vunpack.c.l.b16 %v104
    %v285 = vunpack.c.h.b16 %v104
    %v286 = vunpack.c.l.b16 %v105
    %v287 = vunpack.c.h.b16 %v105
    %v288 = vunpack.c.l.b16 %v106
    %v289 = vunpack.c.h.b16 %v106
    %v290 = vunpack.c.l.b16 %v107
    %v291 = vunpack.c.h.b16 %v107
    %v292 = vunpack.c.l.b16 %v108
    %v293 = vunpack.c.h.b16 %v108
    %v294 = vunpack.c.l.b16 %v109
    %v295 = vunpack.c.h.b16 %v109
    %v296 = vunpack.c.l.b16 %v110
    %v297 = vunpack.c.h.b16 %v110
    %v298 = vunpack.c.l.b16 %v111
    %v299 = vunpack.c.h.b16 %v111
    %v300 = vunpack.c.l.b16 %v112
    %v301 = vunpack.c.h.b16 %v112
    %v302 = vunpack.c.l.b16 %v113
    %v303 = vunpack.c.h.b16 %v113
    %v304 = vunpack.c.l.b16 %v114
    %v305 = vunpack.c.h.b16 %v114
    %v306 = vunpack.c.l.b16 %v115
    %v307 = vunpack.c.h.b16 %v115
    %v308 = vunpack.c.l.b16 %v116
    %v309 = vunpack.c.h.b16 %v116
    %v310 = vunpack.c.l.b16 %v117
    %v311 = vunpack.c.h.b16 %v117
    %v312 = vunpack.c.l.b16 %v118
    %v313 = vunpack.c.h.b16 %v118
    %v314 = vunpack.c.l.b16 %v119
    %v315 = vunpack.c.h.b16 %v119
    %v316 = vunpack.c.l.b16 %v120
    %v317 = vunpack.c.h.b16 %v120
    %v318 = vunpack.c.l.b16 %v121
    %v319 = vunpack.c.h.b16 %v121
    %v320 = vunpack.c.l.b16 %v122
    %v321 = vunpack.c.h.b16 %v122
    %v322 = vunpack.c.l.b16 %v123
    %v323 = vunpack.c.h.b16 %v123
    %v324 = vunpack.c.l.b16 %v124
    %v325 = vunpack.c.h.b16 %v124
    %v326 = vunpack.c.l.b16 %v125
    %v327 = vunpack.c.h.b16 %v125
    %v328 = vunpack.c.l.b16 %v126
    %v329 = vunpack.c.h.b16 %v126
    %v330 = vunpack.c.l.b16 %v127
    %v331 = vunpack.c.h.b16 %v127
    %v332 = vunpack.c.l.b16 %v128
    %v333 = vunpack.c.h.b16 %v128
    %v334 = vunpack.c.l.b16 %v129
    %v335 = vunpack.c.h.b16 %v129
    %v336 = vpack.c.b16 %v210, %v208
    %v337 = vpack.c.b16 %v211, %v209
    %v338 = vpack.c.b16 %v214, %v212
    %v339 = vpack.c.b16 %v215, %v213
    %v340 = vpack.c.b16 %v218, %v216
    %v341 = vpack.c.b16 %v219, %v217
    %v342 = vpack.c.b16 %v222, %v220
    %v343 = vpack.c.b16 %v223, %v221
    %v344 = vpack.c.b16 %v226, %v224
    %v345 = vpack.c.b16 %v227, %v225
    %v346 = vpack.c.b16 %v230, %v228
    %v347 = vpack.c.b16 %v231, %v229
    %v348 = vpack.c.b16 %v234, %v232
    %v349 = vpack.c.b16 %v235, %v233
    %v350 = vpack.c.b16 %v238, %v236
    %v351 = vpack.c.b16 %v239, %v237
    %v352 = vpack.c.b16 %v242, %v240
    %v353 = vpack.c.b16 %v243, %v241
    %v354 = vpack.c.b16 %v246, %v244
    %v355 = vpack.c.b16 %v247, %v245
    %v356 = vpack.c.b16 %v250, %v248
    %v357 = vpack.c.b16 %v251, %v249
    %v358 = vpack.c.b16 %v254, %v252
    %v359 = vpack.c.b16 %v255, %v253
    %v360 = vpack.c.b16 %v258, %v256
    %v361 = vpack.c.b16 %v259, %v257
    %v362 = vpack.c.b16 %v262, %v260
    %v363 = vpack.c.b16 %v263, %v261
    %v364 = vpack.c.b16 %v266, %v264
    %v365 = vpack.c.b16 %v267, %v265
    %v366 = vpack.c.b16 %v270, %v268
    %v367 = vpack.c.b16 %v271, %v269
    %v368 = vpack.c.b16 %v274, %v272
    %v369 = vpack.c.b16 %v275, %v273
    %v370 = vpack.c.b16 %v278, %v276
    %v371 = vpack.c.b16 %v279, %v277
    %v372 = vpack.c.b16 %v282, %v280
    %v373 = vpack.c.b16 %v283, %v281
    %v374 = vpack.c.b16 %v286, %v284
    %v375 = vpack.c.b16 %v287, %v285
    %v376 = vpack.c.b16 %v290, %v288
    %v377 = vpack.c.b16 %v291, %v289
    %v378 = vpack.c.b16 %v294, %v292
    %v379 = vpack.c.b16 %v295, %v293
    %v380 = vpack.c.b16 %v298, %v296
    %v381 = vpack.c.b16 %v299, %v297
    %v382 = vpack.c.b16 %v302, %v300
    %v383 = vpack.c.b16 %v303, %v301
    %v384 = vpack.c.b16 %v306, %v304
    %v385 = vpack.c.b16 %v307, %v305
    %v386 = vpack.c.b16 %v310, %v308
    %v387 = vpack.c.b16 %v311, %v309
    %v388 = vpack.c.b16 %v314, %v312
    %v389 = vpack.c.b16 %v315, %v313
    %v390 = vpack.c.b16 %v318, %v316
    %v391 = vpack.c.b16 %v319, %v317
    %v392 = vpack.c.b16 %v322, %v320
    %v393 = vpack.c.b16 %v323, %v321
    %v394 = vpack.c.b16 %v326, %v324
    %v395 = vpack.c.b16 %v327, %v325
    %v396 = vpack.c.b16 %v330, %v328
    %v397 = vpack.c.b16 %v331, %v329
    %v398 = vpack.c.b16 %v334, %v332
    %v399 = vpack.c.b16 %v335, %v333
    %464 = vmatprep.subr.bf16.mxu0 %v351
    %465 = vmatpush1.bf16.msra.mxu0 %v350
    %466 = vmatprep.subr.bf16.mxu0 %v349
    %467 = vmatpush1.bf16.msra.mxu0 %v348
    %468 = vmatprep.subr.bf16.mxu0 %v347
    %469 = vmatpush1.bf16.msra.mxu0 %v346
    %470 = vmatprep.subr.bf16.mxu0 %v345
    %471 = vmatpush1.bf16.msra.mxu0 %v344
    %472 = vmatprep.subr.bf16.mxu0 %v343
    %473 = vmatpush1.bf16.msra.mxu0 %v342
    %474 = vmatprep.subr.bf16.mxu0 %v341
    %475 = vmatpush1.bf16.msra.mxu0 %v340
    %476 = vmatprep.subr.bf16.mxu0 %v339
    %477 = vmatpush1.bf16.msra.mxu0 %v338
    %478 = vmatprep.subr.bf16.mxu0 %v337
    %479 = vmatpush1.bf16.msra.mxu0 %v336
    %480 = vmatprep.subr.bf16.mxu0 %v367
    %481 = vmatpush2.bf16.msra.mxu0 %v366
    %482 = vmatprep.subr.bf16.mxu0 %v365
    %483 = vmatpush2.bf16.msra.mxu0 %v364
    %484 = vmatprep.subr.bf16.mxu0 %v363
    %485 = vmatpush2.bf16.msra.mxu0 %v362
    %486 = vmatprep.subr.bf16.mxu0 %v361
    %487 = vmatpush2.bf16.msra.mxu0 %v360
    %488 = vmatprep.subr.bf16.mxu0 %v359
    %489 = vmatpush2.bf16.msra.mxu0 %v358
    %490 = vmatprep.subr.bf16.mxu0 %v357
    %491 = vmatpush2.bf16.msra.mxu0 %v356
    %492 = vmatprep.subr.bf16.mxu0 %v355
    %493 = vmatpush2.bf16.msra.mxu0 %v354
    %494 = vmatprep.subr.bf16.mxu0 %v353
    %495 = vmatpush2.bf16.msra.mxu0 %v352
    %496 = vmatprep.mubr.bf16.mxu0 %v137
    %497 = vmatmul.mubr.bf16.gmra.mxu0 %v136
    %v498 = vpop.f32.mrf.mxu0
    %v499 = vadd.f32 0.0, %v498
    %v500 = vpop.f32.mrf.mxu0
    %v501 = vadd.f32 0.0, %v500
    %v502 = vpop.f32.mrf.mxu0
    %v503 = vpop.f32.mrf.mxu0
    %504 = vdwg.mxu0
    %505 = vmatprep.subr.bf16.mxu0 %v383
    %506 = vmatpush1.bf16.msra.mxu0 %v382
    %507 = vmatprep.subr.bf16.mxu0 %v381
    %508 = vmatpush1.bf16.msra.mxu0 %v380
    %509 = vmatprep.subr.bf16.mxu0 %v379
    %510 = vmatpush1.bf16.msra.mxu0 %v378
    %511 = vmatprep.subr.bf16.mxu0 %v377
    %512 = vmatpush1.bf16.msra.mxu0 %v376
    %513 = vmatprep.subr.bf16.mxu0 %v375
    %514 = vmatpush1.bf16.msra.mxu0 %v374
    %515 = vmatprep.subr.bf16.mxu0 %v373
    %516 = vmatpush1.bf16.msra.mxu0 %v372
    %517 = vmatprep.subr.bf16.mxu0 %v371
    %518 = vmatpush1.bf16.msra.mxu0 %v370
    %519 = vmatprep.subr.bf16.mxu0 %v369
    %520 = vmatpush1.bf16.msra.mxu0 %v368
    %521 = vmatprep.subr.bf16.mxu0 %v399
    %522 = vmatpush2.bf16.msra.mxu0 %v398
    %523 = vmatprep.subr.bf16.mxu0 %v397
    %524 = vmatpush2.bf16.msra.mxu0 %v396
    %525 = vmatprep.subr.bf16.mxu0 %v395
    %526 = vmatpush2.bf16.msra.mxu0 %v394
    %527 = vmatprep.subr.bf16.mxu0 %v393
    %528 = vmatpush2.bf16.msra.mxu0 %v392
    %529 = vmatprep.subr.bf16.mxu0 %v391
    %530 = vmatpush2.bf16.msra.mxu0 %v390
    %531 = vmatprep.subr.bf16.mxu0 %v389
    %532 = vmatpush2.bf16.msra.mxu0 %v388
    %533 = vmatprep.subr.bf16.mxu0 %v387
    %534 = vmatpush2.bf16.msra.mxu0 %v386
    %535 = vmatprep.subr.bf16.mxu0 %v385
    %536 = vmatpush2.bf16.msra.mxu0 %v384
    %537 = vmatprep.mubr.bf16.mxu0 %v139
    %538 = vmatmul.mubr.bf16.gmra.mxu0 %v138
    %v539 = vpop.f32.mrf.mxu0
    %v540 = vadd.f32 %v499, %v539
    %v541 = vpop.f32.mrf.mxu0
    %v542 = vadd.f32 %v501, %v541
    %v543 = vpop.f32.mrf.mxu0
    %v544 = vpop.f32.mrf.mxu0
    %545 = vdwg.mxu0
    %v546 = vld [vmem:[%s2] sm:$0x3]
    %v548 = vlaneseq
    %v549 = vshrl.u32 %v548, 7
    %v550 = vsub.s32 0, %v549
    %v551 = vrot.slane %v546, %v550
    %v552 = vlaneseq
    %v553 = vshrl.u32 %v552, 7
    %v554 = vsub.s32 1, %v553
    %v555 = vrot.slane %v546, %v554
    %v558 = vmul.f32 %v540, %v551
    %v559 = vmul.f32 %v542, %v555
    %v560 = vld [vmem:[%s3] sm:$0x3]
    %v562 = vlaneseq
    %v563 = vshrl.u32 %v562, 7
    %v564 = vsub.s32 0, %v563
    %v565 = vrot.slane %v560, %v564
    %v566 = vlaneseq
    %v567 = vshrl.u32 %v566, 7
    %v568 = vsub.s32 1, %v567
    %v569 = vrot.slane %v560, %v568
    %v572 = vadd.f32 %v558, %v565
    %v573 = vadd.f32 %v559, %v569
    %v574 = vmax.f32 %v572, 0.0
    %v575 = vmax.f32 %v573, 0.0
    %v576 = vpack.c.bf16 %v574, %v574
    %v577 = vpack.c.bf16 %v575, %v575
    %v578 = vld [vmem:[#allocation7] sm:$0xf]
    %v579 = vld [vmem:[#allocation7 + $0x4] sm:$0xf]
    %v580 = vld [vmem:[#allocation7 + $0x8] sm:$0xf]
    %v581 = vld [vmem:[#allocation7 + $0xc] sm:$0xf]
    %v582 = vld [vmem:[#allocation7 + $0x10] sm:$0xf]
    %v583 = vld [vmem:[#allocation7 + $0x14] sm:$0xf]
    %v584 = vld [vmem:[#allocation7 + $0x18] sm:$0xf]
    %v585 = vld [vmem:[#allocation7 + $0x1c] sm:$0xf]
    %v586 = vld [vmem:[#allocation7 + $0x20] sm:$0xf]
    %v587 = vld [vmem:[#allocation7 + $0x24] sm:$0xf]
    %v588 = vld [vmem:[#allocation7 + $0x28] sm:$0xf]
    %v589 = vld [vmem:[#allocation7 + $0x2c] sm:$0xf]
    %v590 = vld [vmem:[#allocation7 + $0x30] sm:$0xf]
    %v591 = vld [vmem:[#allocation7 + $0x34] sm:$0xf]
    %v592 = vld [vmem:[#allocation7 + $0x38] sm:$0xf]
    %v593 = vld [vmem:[#allocation7 + $0x3c] sm:$0xf]
    %v594 = vld [vmem:[#allocation7 + $0x40] sm:$0xf]
    %v595 = vld [vmem:[#allocation7 + $0x44] sm:$0xf]
    %v596 = vld [vmem:[#allocation7 + $0x48] sm:$0xf]
    %v597 = vld [vmem:[#allocation7 + $0x4c] sm:$0xf]
    %v598 = vld [vmem:[#allocation7 + $0x50] sm:$0xf]
    %v599 = vld [vmem:[#allocation7 + $0x54] sm:$0xf]
    %v600 = vld [vmem:[#allocation7 + $0x58] sm:$0xf]
    %v601 = vld [vmem:[#allocation7 + $0x5c] sm:$0xf]
    %v602 = vld [vmem:[#allocation7 + $0x60] sm:$0xf]
    %v603 = vld [vmem:[#allocation7 + $0x64] sm:$0xf]
    %v604 = vld [vmem:[#allocation7 + $0x68] sm:$0xf]
    %v605 = vld [vmem:[#allocation7 + $0x6c] sm:$0xf]
    %v606 = vld [vmem:[#allocation7 + $0x70] sm:$0xf]
    %v607 = vld [vmem:[#allocation7 + $0x74] sm:$0xf]
    %v608 = vld [vmem:[#allocation7 + $0x78] sm:$0xf]
    %v609 = vld [vmem:[#allocation7 + $0x7c] sm:$0xf]
    %v610 = vld [vmem:[%s5] sm:$0x1]
    %v612 = vlaneseq
    %v613 = vshrl.u32 %v612, 7
    %v614 = vsub.s32 0, %v613
    %v615 = vrot.slane %v610, %v614
    %v649 = vunpack.c.l.b16 %v578
    %v650 = vunpack.c.l.b16 %v579
    %v651 = vunpack.c.l.b16 %v580
    %v652 = vunpack.c.l.b16 %v581
    %v653 = vunpack.c.l.b16 %v582
    %v654 = vunpack.c.l.b16 %v583
    %v655 = vunpack.c.l.b16 %v584
    %v656 = vunpack.c.l.b16 %v585
    %v657 = vunpack.c.l.b16 %v586
    %v658 = vunpack.c.l.b16 %v587
    %v659 = vunpack.c.l.b16 %v588
    %v660 = vunpack.c.l.b16 %v589
    %v661 = vunpack.c.l.b16 %v590
    %v662 = vunpack.c.l.b16 %v591
    %v663 = vunpack.c.l.b16 %v592
    %v664 = vunpack.c.l.b16 %v593
    %v665 = vunpack.c.l.b16 %v594
    %v666 = vunpack.c.l.b16 %v595
    %v667 = vunpack.c.l.b16 %v596
    %v668 = vunpack.c.l.b16 %v597
    %v669 = vunpack.c.l.b16 %v598
    %v670 = vunpack.c.l.b16 %v599
    %v671 = vunpack.c.l.b16 %v600
    %v672 = vunpack.c.l.b16 %v601
    %v673 = vunpack.c.l.b16 %v602
    %v674 = vunpack.c.l.b16 %v603
    %v675 = vunpack.c.l.b16 %v604
    %v676 = vunpack.c.l.b16 %v605
    %v677 = vunpack.c.l.b16 %v606
    %v678 = vunpack.c.l.b16 %v607
    %v679 = vunpack.c.l.b16 %v608
    %v680 = vunpack.c.l.b16 %v609
    %v681 = vpack.c.b16 %v650, %v649
    %v682 = vpack.c.b16 %v652, %v651
    %v683 = vpack.c.b16 %v654, %v653
    %v684 = vpack.c.b16 %v656, %v655
    %v685 = vpack.c.b16 %v658, %v657
    %v686 = vpack.c.b16 %v660, %v659
    %v687 = vpack.c.b16 %v662, %v661
    %v688 = vpack.c.b16 %v664, %v663
    %v689 = vpack.c.b16 %v666, %v665
    %v690 = vpack.c.b16 %v668, %v667
    %v691 = vpack.c.b16 %v670, %v669
    %v692 = vpack.c.b16 %v672, %v671
    %v693 = vpack.c.b16 %v674, %v673
    %v694 = vpack.c.b16 %v676, %v675
    %v695 = vpack.c.b16 %v678, %v677
    %v696 = vpack.c.b16 %v680, %v679
    %713 = vmatprep.subr.bf16.mxu0 0
    %714 = vmatpush1.bf16.msra.mxu0 %v688
    %715 = vmatprep.subr.bf16.mxu0 0
    %716 = vmatpush1.bf16.msra.mxu0 %v687
    %717 = vmatprep.subr.bf16.mxu0 0
    %718 = vmatpush1.bf16.msra.mxu0 %v686
    %719 = vmatprep.subr.bf16.mxu0 0
    %720 = vmatpush1.bf16.msra.mxu0 %v685
    %721 = vmatprep.subr.bf16.mxu0 0
    %722 = vmatpush1.bf16.msra.mxu0 %v684
    %723 = vmatprep.subr.bf16.mxu0 0
    %724 = vmatpush1.bf16.msra.mxu0 %v683
    %725 = vmatprep.subr.bf16.mxu0 0
    %726 = vmatpush1.bf16.msra.mxu0 %v682
    %727 = vmatprep.subr.bf16.mxu0 0
    %728 = vmatpush1.bf16.msra.mxu0 %v681
    %729 = vmatprep.subr.bf16.mxu0 0
    %730 = vmatpush2.bf16.msra.mxu0 %v696
    %731 = vmatprep.subr.bf16.mxu0 0
    %732 = vmatpush2.bf16.msra.mxu0 %v695
    %733 = vmatprep.subr.bf16.mxu0 0
    %734 = vmatpush2.bf16.msra.mxu0 %v694
    %735 = vmatprep.subr.bf16.mxu0 0
    %736 = vmatpush2.bf16.msra.mxu0 %v693
    %737 = vmatprep.subr.bf16.mxu0 0
    %738 = vmatpush2.bf16.msra.mxu0 %v692
    %739 = vmatprep.subr.bf16.mxu0 0
    %740 = vmatpush2.bf16.msra.mxu0 %v691
    %741 = vmatprep.subr.bf16.mxu0 0
    %742 = vmatpush2.bf16.msra.mxu0 %v690
    %743 = vmatprep.subr.bf16.mxu0 0
    %744 = vmatpush2.bf16.msra.mxu0 %v689
    %745 = vmatprep.mubr.bf16.mxu0 %v577
    %746 = vmatmul.mubr.bf16.gmra.mxu0 %v576
    %v747 = vpop.f32.mrf.mxu0
    %v748 = vadd.f32 %v615, %v747
    %v749 = vpop.f32.mrf.mxu0
    %v750 = vpop.f32.mrf.mxu0
    %v751 = vpop.f32.mrf.mxu0
    %752 = vdwg.mxu0
    %v753 = vtanh.pop %v748
    %754 = vst [vmem:[#allocation8] sm:$0xff] %v753
    // Predicated region
    $region38: #{tpu_custom_call.1} parent=1 // pred_check
      _
    $region39: #{tpu_custom_call.1} parent=1 // pred_check_branch
      %756 = sbr.rel (0) target = $region41
    $region40: #{tpu_custom_call.1} parent=1 // pred_region
      %s758 = ssub.s32 128, 128
      %759 = vsyncadd [#allocation4], %s758
      %s761 = sshll.u32 [#allocation8], 4
      %s762 = int_to_ptr.vmem [resolvable:$true] %s761
      %764 = dma.vmem_to_hbm [thread:$0]  %s762, 128, %s6, [#allocation4]
    $region41: #{tpu_custom_call.1} parent=1 // pred_fallthru
      _
    // Predicated region
    $region42: #{tpu_custom_call.1} parent=1 // pred_check
      _
    $region43: #{tpu_custom_call.1} parent=1 // pred_check_branch
      %766 = sbr.rel (0) target = $region45
    $region44: #{tpu_custom_call.1} parent=1 // pred_region
      %767 = dma.done [#allocation4], 128
    $region45: #{tpu_custom_call.1} parent=1 // pred_fallthru
      _
    %768 = vsyncpa [#allocation3], 1
    %769 = vsyncpa [#allocation6], 1
    %770 = vsyncpa [#allocation4], 1

</llo_original>
